<compile_context>
chip_gen: v5e
topology: v5e:2x2
jax: 0.10.0
libtpu: 0.0.40
codegen_flags: <defaults>
</compile_context>

<pallas_src>
import functools

import jax
import jax.numpy as jnp
from jax import lax
from jax.experimental import pallas as pl
from jax.experimental.pallas import tpu as pltpu


def mhsa_kernel(q_ref, k_ref, v_ref, wq_ref, wk_ref, wv_ref, wo_ref, bo_ref,
                o_ref, acc_ref, *, scale):
    """One grid step = one (batch, q-row-tile, head).

    q_ref  : (tq, D)  query rows for this (batch, head)
    k_ref  : (S,  D)  full key sequence for this (batch, head)
    v_ref  : (S,  D)  full value sequence for this (batch, head)
    wq/wk/wv: (D, D)  per-head-dim projections, stored (in, out)
    wo_ref : (D, E)   this head's row-slice of the fc_out weight, stored (in, out)
    bo_ref : (1, E)   fc_out bias
    o_ref  : (tq, E)  output rows (resident across the head axis)
    acc_ref: (tq, E)  f32 VMEM accumulator
    """
    h = pl.program_id(2)

    @pl.when(h == 0)
    def _():
        acc_ref[...] = jnp.zeros_like(acc_ref)

    # Per-head-dim linear projections (MXU, f32 accumulation).
    qp = jnp.dot(q_ref[...], wq_ref[...], preferred_element_type=jnp.float32)
    kp = jnp.dot(k_ref[...], wk_ref[...], preferred_element_type=jnp.float32)
    vp = jnp.dot(v_ref[...], wv_ref[...], preferred_element_type=jnp.float32)

    # energy[q, k] = <qp[q, :], kp[k, :]>  (contract last dims; no explicit transpose).
    energy = lax.dot_general(qp, kp, (((1,), (1,)), ((), ())),
                             preferred_element_type=jnp.float32) * scale

    # K is fully resident -> single-pass numerically-stable softmax over the key axis.
    m = jnp.max(energy, axis=-1, keepdims=True)
    p = jnp.exp(energy - m)
    l = jnp.sum(p, axis=-1, keepdims=True)
    attn = p * pl.reciprocal(l, approx=False)

    out_h = jnp.dot(attn, vp, preferred_element_type=jnp.float32)           # (tq, D)
    # fc_out fused per head: concat_h(out_h) @ Wo == sum_h out_h @ Wo[h*D:(h+1)*D, :]
    acc_ref[...] += jnp.dot(out_h, wo_ref[...], preferred_element_type=jnp.float32)

    @pl.when(h == pl.num_programs(2) - 1)
    def _():
        o_ref[...] = (acc_ref[...] + bo_ref[...]).astype(o_ref.dtype)


def multi_head_self_attention(values, keys, query, wq, wk, wv, wo, bo,
                              *, num_heads, tq=None):
    """values/keys/query: (B, S, E). wq/wk/wv: (D, D) stored (in, out).
    wo: (E, E) stored (in, out). bo: (E,)."""
    B, S, E = query.shape
    assert values.shape == query.shape and keys.shape == query.shape
    D = E // num_heads
    assert D * num_heads == E, "embed_size must be divisible by num_heads"

    # Row tile over the query/token axis. Use the whole sequence when small
    # (minimizes per-grid-step overhead), cap at 512 rows for VMEM headroom on v7x.
    if tq is None:
        tq = S if S <= 512 else 512
    assert S % tq == 0 and (tq % 8 == 0 or tq == S)

    # (B, S, E) -> (B, H, S, D): each grid step sees contiguous (tq, D)/(S, D) slabs.
    def to_heads(x):
        return x.reshape(B, S, num_heads, D).transpose(0, 2, 1, 3)
    q4, k4, v4 = to_heads(query), to_heads(keys), to_heads(values)

    scale = 1.0 / (E ** 0.5)   # reference scales by sqrt(embed_size), not sqrt(head_dim)
    kernel = functools.partial(mhsa_kernel, scale=scale)

    out = pl.pallas_call(
        kernel,
        out_shape=jax.ShapeDtypeStruct((B, S, E), query.dtype),
        grid_spec=pltpu.PrefetchScalarGridSpec(
            num_scalar_prefetch=0,
            grid=(B, S // tq, num_heads),                      # heads = reduction axis, last
            in_specs=[
                pl.BlockSpec((None, None, tq, D), lambda b, i, h: (b, h, i, 0)),  # Q tile
                pl.BlockSpec((None, None, S, D),  lambda b, i, h: (b, h, 0, 0)),  # K (full seq)
                pl.BlockSpec((None, None, S, D),  lambda b, i, h: (b, h, 0, 0)),  # V (full seq)
                pl.BlockSpec((D, D), lambda b, i, h: (0, 0)),   # Wq (resident)
                pl.BlockSpec((D, D), lambda b, i, h: (0, 0)),   # Wk (resident)
                pl.BlockSpec((D, D), lambda b, i, h: (0, 0)),   # Wv (resident)
                pl.BlockSpec((D, E), lambda b, i, h: (h, 0)),   # Wo row-slice for head h
                pl.BlockSpec((1, E), lambda b, i, h: (0, 0)),   # bo (resident)
            ],
            # Output last dim is E -> lane-dense for real GPT-2 sizes (E>=128);
            # constant over h -> accumulator-resident across the head axis.
            out_specs=pl.BlockSpec((None, tq, E), lambda b, i, h: (b, i, 0)),
            scratch_shapes=[pltpu.VMEM((tq, E), jnp.float32)],
        ),
        compiler_params=pltpu.CompilerParams(
            # batch and q-tile axes shard across TensorCores (v7x megacore);
            # head axis is the accumulation loop.
            dimension_semantics=("parallel", "parallel", "arbitrary")),
    )(q4, k4, v4, wq, wk, wv, wo, bo.reshape(1, E))
    return out


if __name__ == "__main__":
    # Small shapes consistent with the module: embed_size=32, num_heads=4 -> head_dim=8.
    B, S, E, H = 2, 8, 32, 4
    D = E // H

    key = jax.random.PRNGKey(0)
    kv_, kk_, kq_, kwq, kwk, kwv, kwo, kbo = jax.random.split(key, 8)

    v_in = jax.random.normal(kv_, (B, S, E), dtype=jnp.float32)
    k_in = jax.random.normal(kk_, (B, S, E), dtype=jnp.float32)
    q_in = jax.random.normal(kq_, (B, S, E), dtype=jnp.float32)

    # nn.Linear-style U(-1/sqrt(fan_in), 1/sqrt(fan_in)) init, stored pre-transposed (in, out).
    bd = 1.0 / (D ** 0.5)
    wq = jax.random.uniform(kwq, (D, D), minval=-bd, maxval=bd, dtype=jnp.float32)
    wk = jax.random.uniform(kwk, (D, D), minval=-bd, maxval=bd, dtype=jnp.float32)
    wv = jax.random.uniform(kwv, (D, D), minval=-bd, maxval=bd, dtype=jnp.float32)
    be = 1.0 / (E ** 0.5)
    wo = jax.random.uniform(kwo, (E, E), minval=-be, maxval=be, dtype=jnp.float32)
    bo = jax.random.uniform(kbo, (E,), minval=-be, maxval=be, dtype=jnp.float32)

    out = multi_head_self_attention(v_in, k_in, q_in, wq, wk, wv, wo, bo, num_heads=H)
    out = jax.block_until_ready(out)

    # Pure-JAX reference of the effective forward semantics (mask=None).
    hp = lax.Precision.HIGHEST
    q4 = q_in.reshape(B, S, H, D)
    k4 = k_in.reshape(B, S, H, D)
    v4 = v_in.reshape(B, S, H, D)
    qp = jnp.einsum('bshd,de->bshe', q4, wq, precision=hp)
    kp = jnp.einsum('bshd,de->bshe', k4, wk, precision=hp)
    vp = jnp.einsum('bshd,de->bshe', v4, wv, precision=hp)
    energy = jnp.einsum('nqhd,nkhd->nhqk', qp, kp, precision=hp)
    attn = jax.nn.softmax(energy / (E ** 0.5), axis=-1)
    ctx = jnp.einsum('nhqk,nkhd->nqhd', attn, vp, precision=hp).reshape(B, S, E)
    ref = jnp.einsum('bse,ef->bsf', ctx, wo, precision=hp) + bo

    assert out.shape == (B, S, E)
    assert jnp.allclose(out, ref, atol=2e-3, rtol=2e-3), float(jnp.max(jnp.abs(out - ref)))

    print("KERNEL_OK")
</pallas_src>

<mosaic_0001>
module attributes {stable_mosaic.version = 11 : i64} {
  func.func @mhsa_kernel(%arg0: i32, %arg1: i32, %arg2: i32, %arg3: memref<1x1x8x8xf32, #tpu.memory_space<vmem>>, %arg4: memref<1x1x8x8xf32, #tpu.memory_space<vmem>>, %arg5: memref<1x1x8x8xf32, #tpu.memory_space<vmem>>, %arg6: memref<8x8xf32, #tpu.memory_space<vmem>>, %arg7: memref<8x8xf32, #tpu.memory_space<vmem>>, %arg8: memref<8x8xf32, #tpu.memory_space<vmem>>, %arg9: memref<8x32xf32, #tpu.memory_space<vmem>>, %arg10: memref<1x32xf32, #tpu.memory_space<vmem>>, %arg11: memref<1x8x32xf32, #tpu.memory_space<vmem>>, %arg12: memref<8x32xf32, #tpu.memory_space<vmem>>) attributes {dimension_semantics = [#tpu.dimension_semantics<parallel>, #tpu.dimension_semantics<parallel>, #tpu.dimension_semantics<arbitrary>], iteration_bounds = array<i64: 2, 1, 4>, scalar_prefetch = 0 : i64, scratch_operands = 1 : i64, tpu.core_type = #tpu.core_type<tc>, window_params = [{transform_indices = @transform_0, window_bounds = array<i64: 1, 1, 8, 8>}, {transform_indices = @transform_1, window_bounds = array<i64: 1, 1, 8, 8>}, {transform_indices = @transform_2, window_bounds = array<i64: 1, 1, 8, 8>}, {pipeline_mode = #tpu.pipeline_mode<synchronous>, transform_indices = @transform_3, window_bounds = array<i64: 8, 8>}, {pipeline_mode = #tpu.pipeline_mode<synchronous>, transform_indices = @transform_4, window_bounds = array<i64: 8, 8>}, {pipeline_mode = #tpu.pipeline_mode<synchronous>, transform_indices = @transform_5, window_bounds = array<i64: 8, 8>}, {transform_indices = @transform_6, window_bounds = array<i64: 8, 32>}, {pipeline_mode = #tpu.pipeline_mode<synchronous>, transform_indices = @transform_7, window_bounds = array<i64: 1, 32>}, {transform_indices = @transform_8, window_bounds = array<i64: 1, 8, 32>}]} {
    %c0_i32 = arith.constant 0 : i32
    %0 = arith.cmpi eq, %arg2, %c0_i32 : i32
    %1 = arith.extui %0 : i1 to i32
    %c0_i32_0 = arith.constant 0 : i32
    %2 = arith.cmpi ne, %1, %c0_i32_0 : i32
    scf.if %2 {
      %cst_33 = arith.constant 0.000000e+00 : f32
      %37 = vector.broadcast %cst_33 : f32 to vector<8x32xf32>
      %c0_34 = arith.constant 0 : index
      %c0_35 = arith.constant 0 : index
      %38 = vector.load %arg12[%c0_34, %c0_35] : memref<8x32xf32, #tpu.memory_space<vmem>>, vector<8x32xf32>
      tpu.vector_store %arg12[%c0_34, %c0_35], %37 {strides = array<i32>} : memref<8x32xf32, #tpu.memory_space<vmem>>, vector<8x32xf32>,
    } else {
    }
    %c0 = arith.constant 0 : index
    %c0_1 = arith.constant 0 : index
    %c0_2 = arith.constant 0 : index
    %c0_3 = arith.constant 0 : index
    %3 = vector.load %arg3[%c0, %c0_1, %c0_2, %c0_3] : memref<1x1x8x8xf32, #tpu.memory_space<vmem>>, vector<1x1x8x8xf32>
    %4 = vector.shape_cast %3 : vector<1x1x8x8xf32> to vector<8x8xf32>
    %c0_4 = arith.constant 0 : index
    %c0_5 = arith.constant 0 : index
    %5 = vector.load %arg6[%c0_4, %c0_5] : memref<8x8xf32, #tpu.memory_space<vmem>>, vector<8x8xf32>
    %cst = arith.constant dense<0.000000e+00> : vector<8x8xf32>
    %6 = tpu.matmul %4, %5, %cst {dimension_numbers = #tpu.dot_dimension_numbers<[1], [0], [0], [1], [0, 0, 1, 1], [], []>} : vector<8x8xf32>, vector<8x8xf32>, vector<8x8xf32> -> vector<8x8xf32>
    %c0_6 = arith.constant 0 : index
    %c0_7 = arith.constant 0 : index
    %c0_8 = arith.constant 0 : index
    %c0_9 = arith.constant 0 : index
    %7 = vector.load %arg4[%c0_6, %c0_7, %c0_8, %c0_9] : memref<1x1x8x8xf32, #tpu.memory_space<vmem>>, vector<1x1x8x8xf32>
    %8 = vector.shape_cast %7 : vector<1x1x8x8xf32> to vector<8x8xf32>
    %c0_10 = arith.constant 0 : index
    %c0_11 = arith.constant 0 : index
    %9 = vector.load %arg7[%c0_10, %c0_11] : memref<8x8xf32, #tpu.memory_space<vmem>>, vector<8x8xf32>
    %cst_12 = arith.constant dense<0.000000e+00> : vector<8x8xf32>
    %10 = tpu.matmul %8, %9, %cst_12 {dimension_numbers = #tpu.dot_dimension_numbers<[1], [0], [0], [1], [0, 0, 1, 1], [], []>} : vector<8x8xf32>, vector<8x8xf32>, vector<8x8xf32> -> vector<8x8xf32>
    %c0_13 = arith.constant 0 : index
    %c0_14 = arith.constant 0 : index
    %c0_15 = arith.constant 0 : index
    %c0_16 = arith.constant 0 : index
    %11 = vector.load %arg5[%c0_13, %c0_14, %c0_15, %c0_16] : memref<1x1x8x8xf32, #tpu.memory_space<vmem>>, vector<1x1x8x8xf32>
    %12 = vector.shape_cast %11 : vector<1x1x8x8xf32> to vector<8x8xf32>
    %c0_17 = arith.constant 0 : index
    %c0_18 = arith.constant 0 : index
    %13 = vector.load %arg8[%c0_17, %c0_18] : memref<8x8xf32, #tpu.memory_space<vmem>>, vector<8x8xf32>
    %cst_19 = arith.constant dense<0.000000e+00> : vector<8x8xf32>
    %14 = tpu.matmul %12, %13, %cst_19 {dimension_numbers = #tpu.dot_dimension_numbers<[1], [0], [0], [1], [0, 0, 1, 1], [], []>} : vector<8x8xf32>, vector<8x8xf32>, vector<8x8xf32> -> vector<8x8xf32>
    %cst_20 = arith.constant dense<0.000000e+00> : vector<8x8xf32>
    %15 = tpu.matmul %6, %10, %cst_20 {dimension_numbers = #tpu.dot_dimension_numbers<[1], [1], [0], [0], [0, 0, 1, 0], [], []>} : vector<8x8xf32>, vector<8x8xf32>, vector<8x8xf32> -> vector<8x8xf32>
    %cst_21 = arith.constant 0.176776692 : f32
    %16 = vector.broadcast %cst_21 : f32 to vector<8x8xf32>
    %17 = arith.mulf %15, %16 : vector<8x8xf32>
    %cst_22 = arith.constant dense<0xFF800000> : vector<8xf32>
    %18 = vector.multi_reduction <maximumf>, %17, %cst_22 [1] : vector<8x8xf32> to vector<8xf32>
    %19 = vector.shape_cast %18 : vector<8xf32> to vector<8x1xf32>
    %20 = vector.broadcast %19 : vector<8x1xf32> to vector<8x8xf32>
    %21 = arith.subf %17, %20 : vector<8x8xf32>
    %22 = math.exp %21 : vector<8x8xf32>
    %cst_23 = arith.constant dense<0.000000e+00> : vector<8xf32>
    %23 = vector.multi_reduction <add>, %22, %cst_23 [1] : vector<8x8xf32> to vector<8xf32>
    %24 = vector.shape_cast %23 : vector<8xf32> to vector<8x1xf32>
    %25 = tpu.reciprocal %24 : vector<8x1xf32> -> vector<8x1xf32>
    %26 = vector.broadcast %25 : vector<8x1xf32> to vector<8x8xf32>
    %27 = arith.mulf %22, %26 : vector<8x8xf32>
    %cst_24 = arith.constant dense<0.000000e+00> : vector<8x8xf32>
    %28 = tpu.matmul %27, %14, %cst_24 {dimension_numbers = #tpu.dot_dimension_numbers<[1], [0], [0], [1], [0, 0, 1, 1], [], []>} : vector<8x8xf32>, vector<8x8xf32>, vector<8x8xf32> -> vector<8x8xf32>
    %c0_25 = arith.constant 0 : index
    %c0_26 = arith.constant 0 : index
    %29 = vector.load %arg12[%c0_25, %c0_26] : memref<8x32xf32, #tpu.memory_space<vmem>>, vector<8x32xf32>
    %c0_27 = arith.constant 0 : index
    %c0_28 = arith.constant 0 : index
    %30 = vector.load %arg9[%c0_27, %c0_28] : memref<8x32xf32, #tpu.memory_space<vmem>>, vector<8x32xf32>
    %cst_29 = arith.constant dense<0.000000e+00> : vector<8x32xf32>
    %31 = tpu.matmul %28, %30, %cst_29 {dimension_numbers = #tpu.dot_dimension_numbers<[1], [0], [0], [1], [0, 0, 1, 1], [], []>} : vector<8x8xf32>, vector<8x32xf32>, vector<8x32xf32> -> vector<8x32xf32>
    %32 = arith.addf %29, %31 : vector<8x32xf32>
    %c0_30 = arith.constant 0 : index
    %c0_31 = arith.constant 0 : index
    %33 = vector.load %arg12[%c0_30, %c0_31] : memref<8x32xf32, #tpu.memory_space<vmem>>, vector<8x32xf32>
    tpu.vector_store %arg12[%c0_30, %c0_31], %32 {strides = array<i32>} : memref<8x32xf32, #tpu.memory_space<vmem>>, vector<8x32xf32>,
    %c3_i32 = arith.constant 3 : i32
    %34 = arith.cmpi eq, %arg2, %c3_i32 : i32
    %35 = arith.extui %34 : i1 to i32
    %c0_i32_32 = arith.constant 0 : i32
    %36 = arith.cmpi ne, %35, %c0_i32_32 : i32
    scf.if %36 {
      %c0_33 = arith.constant 0 : index
      %c0_34 = arith.constant 0 : index
      %37 = vector.load %arg12[%c0_33, %c0_34] : memref<8x32xf32, #tpu.memory_space<vmem>>, vector<8x32xf32>
      %c0_35 = arith.constant 0 : index
      %c0_36 = arith.constant 0 : index
      %38 = vector.load %arg10[%c0_35, %c0_36] : memref<1x32xf32, #tpu.memory_space<vmem>>, vector<1x32xf32>
      %39 = vector.broadcast %38 : vector<1x32xf32> to vector<8x32xf32>
      %40 = arith.addf %37, %39 : vector<8x32xf32>
      %c0_37 = arith.constant 0 : index
      %c0_38 = arith.constant 0 : index
      %c0_39 = arith.constant 0 : index
      %41 = vector.load %arg11[%c0_37, %c0_38, %c0_39] : memref<1x8x32xf32, #tpu.memory_space<vmem>>, vector<1x8x32xf32>
      %42 = vector.shape_cast %41 : vector<1x8x32xf32> to vector<8x32xf32>
      %43 = vector.shape_cast %40 : vector<8x32xf32> to vector<1x8x32xf32>
      tpu.vector_store %arg11[%c0_37, %c0_38, %c0_39], %43 {strides = array<i32>} : memref<1x8x32xf32, #tpu.memory_space<vmem>>, vector<1x8x32xf32>,
    } else {
    }
    return
  }
  func.func @transform_0(%arg0: i32, %arg1: i32, %arg2: i32) -> (i32, i32, i32, i32) {
    %c0_i32 = arith.constant 0 : i32
    %c0_i32_0 = arith.constant 0 : i32
    return %arg0, %arg2, %arg1, %c0_i32 : i32, i32, i32, i32
  }
  func.func @transform_1(%arg0: i32, %arg1: i32, %arg2: i32) -> (i32, i32, i32, i32) {
    %c0_i32 = arith.constant 0 : i32
    %c0_i32_0 = arith.constant 0 : i32
    %c0_i32_1 = arith.constant 0 : i32
    return %arg0, %arg2, %c0_i32, %c0_i32_0 : i32, i32, i32, i32
  }
  func.func @transform_2(%arg0: i32, %arg1: i32, %arg2: i32) -> (i32, i32, i32, i32) {
    %c0_i32 = arith.constant 0 : i32
    %c0_i32_0 = arith.constant 0 : i32
    %c0_i32_1 = arith.constant 0 : i32
    return %arg0, %arg2, %c0_i32, %c0_i32_0 : i32, i32, i32, i32
  }
  func.func @transform_3(%arg0: i32, %arg1: i32, %arg2: i32) -> (i32, i32) {
    %c0_i32 = arith.constant 0 : i32
    %c0_i32_0 = arith.constant 0 : i32
    %c0_i32_1 = arith.constant 0 : i32
    return %c0_i32, %c0_i32_0 : i32, i32
  }
  func.func @transform_4(%arg0: i32, %arg1: i32, %arg2: i32) -> (i32, i32) {
    %c0_i32 = arith.constant 0 : i32
    %c0_i32_0 = arith.constant 0 : i32
    %c0_i32_1 = arith.constant 0 : i32
    return %c0_i32, %c0_i32_0 : i32, i32
  }
  func.func @transform_5(%arg0: i32, %arg1: i32, %arg2: i32) -> (i32, i32) {
    %c0_i32 = arith.constant 0 : i32
    %c0_i32_0 = arith.constant 0 : i32
    %c0_i32_1 = arith.constant 0 : i32
    return %c0_i32, %c0_i32_0 : i32, i32
  }
  func.func @transform_6(%arg0: i32, %arg1: i32, %arg2: i32) -> (i32, i32) {
    %c0_i32 = arith.constant 0 : i32
    %c0_i32_0 = arith.constant 0 : i32
    return %arg2, %c0_i32 : i32, i32
  }
  func.func @transform_7(%arg0: i32, %arg1: i32, %arg2: i32) -> (i32, i32) {
    %c0_i32 = arith.constant 0 : i32
    %c0_i32_0 = arith.constant 0 : i32
    %c0_i32_1 = arith.constant 0 : i32
    return %c0_i32, %c0_i32_0 : i32, i32
  }
  func.func @transform_8(%arg0: i32, %arg1: i32, %arg2: i32) -> (i32, i32, i32) {
    %c0_i32 = arith.constant 0 : i32
    %c0_i32_0 = arith.constant 0 : i32
    return %arg0, %arg1, %c0_i32 : i32, i32, i32
  }
}

</mosaic_0001>

<llo_original>
// kernel: tpu_custom_call.1
$region0: #{tpu_custom_call.1}
  #allocation0 [shape = 'u32[]', space=smem, size = 0x4, offset = 0x4, fixed_abs, tag = 'smem constant byte address 0x4 - core index']
  #allocation1 [shape = 'u32[72,128]{1,0:T(1,128)}', space=vmem, size = 0x9000, scoped, tag = 'internal scratch']
  #allocation2 [shape = 'f32[8,32]{1,0:T(8,128)}', space=vmem, size = 0x1000, scoped, tag = 'scratch operand']
  %s0 = inlined_call_operand.hbm [shape: f32[2,4,8,8], index: 0, kind: input, shape index: {}]
  %s1 = inlined_call_operand.hbm [shape: f32[2,4,8,8], index: 1, kind: input, shape index: {}]
  %s2 = inlined_call_operand.hbm [shape: f32[2,4,8,8], index: 2, kind: input, shape index: {}]
  %s3 = inlined_call_operand.hbm [shape: f32[8,8], index: 3, kind: input, shape index: {}]
  %s4 = inlined_call_operand.hbm [shape: f32[8,8], index: 4, kind: input, shape index: {}]
  %s5 = inlined_call_operand.hbm [shape: f32[8,8], index: 5, kind: input, shape index: {}]
  %s6 = inlined_call_operand.hbm [shape: f32[32,32], index: 6, kind: input, shape index: {}]
  %s7 = inlined_call_operand.vmem [shape: f32[1,32], index: 7, kind: input, shape index: {}]
  %s8 = inlined_call_operand.hbm [shape: f32[2,8,32], index: 8, kind: output, shape index: {}]
  %s9 = sld [smem:[#allocation0]]
  $region101: #{tpu_custom_call.1} parent=0
    _
  %s11 = ssub.s32 1, %s9
  %s12 = scalar_select 0, %s11, %s9
  $region1: #{tpu_custom_call.1} parent=0
    #allocation3 [shape = 'u8[8192]{0}', space=vmem, size = 0x2000, scoped, tag = 'input window, operand 0']
    #allocation4 [shape = 's32[2]{0}', space=sflag, size = 0x8, scoped, tag = 'scoped memory for tpu_custom_call.1']
    #allocation5 [shape = 's32[2]{0}', space=sflag, size = 0x8, scoped, tag = 'scoped memory for tpu_custom_call.1']
    #allocation6 [shape = 'u8[8192]{0}', space=vmem, size = 0x2000, scoped, tag = 'input window, operand 1']
    #allocation7 [shape = 's32[2]{0}', space=sflag, size = 0x8, scoped, tag = 'scoped memory for tpu_custom_call.1']
    #allocation8 [shape = 'u8[8192]{0}', space=vmem, size = 0x2000, scoped, tag = 'input window, operand 2']
    #allocation9 [shape = 'u8[4096]{0}', space=vmem, size = 0x1000, scoped, tag = 'input window, operand 3, single buffered']
    #allocation10 [shape = 's32[1]{0}', space=sflag, size = 0x4, scoped, tag = 'scoped memory for tpu_custom_call.1']
    #allocation11 [shape = 'u8[4096]{0}', space=vmem, size = 0x1000, scoped, tag = 'input window, operand 4, single buffered']
    #allocation12 [shape = 'u8[4096]{0}', space=vmem, size = 0x1000, scoped, tag = 'input window, operand 5, single buffered']
    #allocation13 [shape = 's32[1]{0}', space=sflag, size = 0x4, scoped, tag = 'scoped memory for tpu_custom_call.1']
    #allocation14 [shape = 'u8[8192]{0}', space=vmem, size = 0x2000, scoped, tag = 'input window, operand 6']
    #allocation15 [shape = 'u8[8192]{0}', space=vmem, size = 0x2000, scoped, tag = 'output window, operand 0']
    %13 = vsyncpa [#allocation4], 0
    %s14 = scalar_lea.sflag [#allocation4], 1
    %15 = vsyncpa %s14, 0
    %16 = vsyncpa [#allocation7], 0
    %s17 = scalar_lea.sflag [#allocation7], 1
    %18 = vsyncpa %s17, 0
    %19 = vsyncpa [#allocation10], 0
    %20 = vsyncpa [#allocation13], 0
    %21 = vsyncpa [#allocation5], 0
    %s22 = scalar_lea.sflag [#allocation5], 1
    %23 = vsyncpa %s22, 0
    loop: start=0, step=1, limit=10
    $region2: #{tpu_custom_call.1} parent=1 // loop_pre_header
      _
    $region3: #{tpu_custom_call.1} parent=1 // loop_header
      %s25 = sphi 0, %s29
      %p26 = scmp.ge.s32.totalorder %s25, 10
      %s32 = sphi 0, %s51
      %s33 = sphi 0, %s47
      %s34 = sphi 0, %s43
      %s35 = sphi 0, %s32
      %s36 = sphi 0, %s33
      %s37 = sphi 0, %s34
      %s38 = sphi 0, %s35
      %s39 = sphi 0, %s36
      %s40 = sphi 0, %s37
      %s58 = sphi 0, %s60
      %s61 = sphi 0, %s58
      %s62 = sphi 0, %s61
      %s78 = sphi 0, %s62
      %s86 = sphi 0, %s88
      %s89 = sphi 0, %s86
      %s90 = sphi 0, %s89
      %s106 = sphi 0, %s90
      %s114 = sphi 0, %s116
      %s117 = sphi 0, %s114
      %s118 = sphi 0, %s117
      %s134 = sphi 0, %s118
      %s138 = sphi 0, %s138
      %s140 = sphi 0, %s138
      %s141 = sphi 0, %s140
      %s155 = sphi 0, %s141
      %s159 = sphi 0, %s159
      %s161 = sphi 0, %s159
      %s162 = sphi 0, %s161
      %s176 = sphi 0, %s162
      %s180 = sphi 0, %s180
      %s182 = sphi 0, %s180
      %s183 = sphi 0, %s182
      %s197 = sphi 0, %s183
      %s203 = sphi 0, %s205
      %s206 = sphi 0, %s203
      %s207 = sphi 0, %s206
      %s223 = sphi 0, %s207
      %s227 = sphi 0, %s227
      %s229 = sphi 0, %s227
      %s230 = sphi 0, %s229
      %s244 = sphi 0, %s230
      %s252 = sphi 0, %s254
      %s255 = sphi 0, %s252
      %s256 = sphi 0, %s255
      %s272 = sphi 0, %s256
    $region4: #{tpu_custom_call.1} parent=1 // loop_header_branch
      %28 = sbr.rel (%p26) target = $region8
    $region5: #{tpu_custom_call.1} parent=1 // loop_body
      %s30 = ssub.s32 %s25, 1
      %s31 = ssub.s32 %s25, 2
      %s41 = sadd.s32 1, %s34
      %p42 = scmp.ge.s32.totalorder %s41, 4
      %s43 = scalar_select %p42, 0, %s41
      %s44 = sadd.s32 1, %s33
      %s45 = scalar_select %p42, %s44, %s33
      %p46 = scmp.ge.s32.totalorder %s45, 1
      %s47 = scalar_select %p46, 0, %s45
      %s48 = sadd.s32 1, %s32
      %s49 = scalar_select %p46, %s48, %s32
      %p50 = scmp.ge.s32.totalorder %s49, 2
      %s51 = scalar_select %p50, 0, %s49
      %s52 = ssub.s32 %s32, %s51
      %s53 = ssub.s32 %s34, %s43
      %s54 = sor.u32 %s52, %s53
      %s55 = ssub.s32 %s33, %s47
      %s56 = sor.u32 %s54, %s55
      %p57 = scmp.eq.s32.totalorder %s56, 0
      %s59 = sadd.s32 %s58, 1
      %s60 = scalar_select %p57, %s58, %s59
      %p63 = pneg %p57
      %p64 = scmp.eq.s32.totalorder %s25, 7
      %p65 = por %p63, %p64
      %p66 = scmp.ne.s32.totalorder %s58, %s61
      %p67 = scmp.eq.s32.totalorder %s25, 0
      %p68 = por %p66, %p67
      %p69 = scmp.ne.s32.totalorder %s58, %s61
      %p70 = scmp.eq.s32.totalorder %s30, 7
      %p71 = por %p69, %p70
      %p72 = scmp.ne.s32.totalorder %s61, %s62
      %p73 = scmp.eq.s32.totalorder %s30, 0
      %p74 = por %p72, %p73
      %p75 = scmp.ne.s32.totalorder %s61, %s62
      %p76 = scmp.eq.s32.totalorder %s31, 7
      %p77 = por %p75, %p76
      %p79 = scmp.ne.s32.totalorder %s62, %s78
      %p80 = scmp.eq.s32.totalorder %s31, 0
      %p81 = por %p79, %p80
      %s82 = ssub.s32 %s32, %s51
      %s83 = ssub.s32 %s34, %s43
      %s84 = sor.u32 %s82, %s83
      %p85 = scmp.eq.s32.totalorder %s84, 0
      %s87 = sadd.s32 %s86, 1
      %s88 = scalar_select %p85, %s86, %s87
      %p91 = pneg %p85
      %p92 = scmp.eq.s32.totalorder %s25, 7
      %p93 = por %p91, %p92
      %p94 = scmp.ne.s32.totalorder %s86, %s89
      %p95 = scmp.eq.s32.totalorder %s25, 0
      %p96 = por %p94, %p95
      %p97 = scmp.ne.s32.totalorder %s86, %s89
      %p98 = scmp.eq.s32.totalorder %s30, 7
      %p99 = por %p97, %p98
      %p100 = scmp.ne.s32.totalorder %s89, %s90
      %p101 = scmp.eq.s32.totalorder %s30, 0
      %p102 = por %p100, %p101
      %p103 = scmp.ne.s32.totalorder %s89, %s90
      %p104 = scmp.eq.s32.totalorder %s31, 7
      %p105 = por %p103, %p104
      %p107 = scmp.ne.s32.totalorder %s90, %s106
      %p108 = scmp.eq.s32.totalorder %s31, 0
      %p109 = por %p107, %p108
      %s110 = ssub.s32 %s32, %s51
      %s111 = ssub.s32 %s34, %s43
      %s112 = sor.u32 %s110, %s111
      %p113 = scmp.eq.s32.totalorder %s112, 0
      %s115 = sadd.s32 %s114, 1
      %s116 = scalar_select %p113, %s114, %s115
      %p119 = pneg %p113
      %p120 = scmp.eq.s32.totalorder %s25, 7
      %p121 = por %p119, %p120
      %p122 = scmp.ne.s32.totalorder %s114, %s117
      %p123 = scmp.eq.s32.totalorder %s25, 0
      %p124 = por %p122, %p123
      %p125 = scmp.ne.s32.totalorder %s114, %s117
      %p126 = scmp.eq.s32.totalorder %s30, 7
      %p127 = por %p125, %p126
      %p128 = scmp.ne.s32.totalorder %s117, %s118
      %p129 = scmp.eq.s32.totalorder %s30, 0
      %p130 = por %p128, %p129
      %p131 = scmp.ne.s32.totalorder %s117, %s118
      %p132 = scmp.eq.s32.totalorder %s31, 7
      %p133 = por %p131, %p132
      %p135 = scmp.ne.s32.totalorder %s118, %s134
      %p136 = scmp.eq.s32.totalorder %s31, 0
      %p137 = por %p135, %p136
      %s139 = sadd.s32 %s138, 1
      %p142 = scmp.eq.s32.totalorder %s25, 7
      %p143 = scmp.ne.s32.totalorder %s138, %s140
      %p144 = scmp.eq.s32.totalorder %s25, 0
      %p145 = por %p143, %p144
      %p146 = scmp.ne.s32.totalorder %s138, %s140
      %p147 = scmp.eq.s32.totalorder %s30, 7
      %p148 = por %p146, %p147
      %p149 = scmp.ne.s32.totalorder %s140, %s141
      %p150 = scmp.eq.s32.totalorder %s30, 0
      %p151 = por %p149, %p150
      %p152 = scmp.ne.s32.totalorder %s140, %s141
      %p153 = scmp.eq.s32.totalorder %s31, 7
      %p154 = por %p152, %p153
      %p156 = scmp.ne.s32.totalorder %s141, %s155
      %p157 = scmp.eq.s32.totalorder %s31, 0
      %p158 = por %p156, %p157
      %s160 = sadd.s32 %s159, 1
      %p163 = scmp.eq.s32.totalorder %s25, 7
      %p164 = scmp.ne.s32.totalorder %s159, %s161
      %p165 = scmp.eq.s32.totalorder %s25, 0
      %p166 = por %p164, %p165
      %p167 = scmp.ne.s32.totalorder %s159, %s161
      %p168 = scmp.eq.s32.totalorder %s30, 7
      %p169 = por %p167, %p168
      %p170 = scmp.ne.s32.totalorder %s161, %s162
      %p171 = scmp.eq.s32.totalorder %s30, 0
      %p172 = por %p170, %p171
      %p173 = scmp.ne.s32.totalorder %s161, %s162
      %p174 = scmp.eq.s32.totalorder %s31, 7
      %p175 = por %p173, %p174
      %p177 = scmp.ne.s32.totalorder %s162, %s176
      %p178 = scmp.eq.s32.totalorder %s31, 0
      %p179 = por %p177, %p178
      %s181 = sadd.s32 %s180, 1
      %p184 = scmp.eq.s32.totalorder %s25, 7
      %p185 = scmp.ne.s32.totalorder %s180, %s182
      %p186 = scmp.eq.s32.totalorder %s25, 0
      %p187 = por %p185, %p186
      %p188 = scmp.ne.s32.totalorder %s180, %s182
      %p189 = scmp.eq.s32.totalorder %s30, 7
      %p190 = por %p188, %p189
      %p191 = scmp.ne.s32.totalorder %s182, %s183
      %p192 = scmp.eq.s32.totalorder %s30, 0
      %p193 = por %p191, %p192
      %p194 = scmp.ne.s32.totalorder %s182, %s183
      %p195 = scmp.eq.s32.totalorder %s31, 7
      %p196 = por %p194, %p195
      %p198 = scmp.ne.s32.totalorder %s183, %s197
      %p199 = scmp.eq.s32.totalorder %s31, 0
      %p200 = por %p198, %p199
      %s201 = ssub.s32 %s34, %s43
      %p202 = scmp.eq.s32.totalorder %s201, 0
      %s204 = sadd.s32 %s203, 1
      %s205 = scalar_select %p202, %s203, %s204
      %p208 = pneg %p202
      %p209 = scmp.eq.s32.totalorder %s25, 7
      %p210 = por %p208, %p209
      %p211 = scmp.ne.s32.totalorder %s203, %s206
      %p212 = scmp.eq.s32.totalorder %s25, 0
      %p213 = por %p211, %p212
      %p214 = scmp.ne.s32.totalorder %s203, %s206
      %p215 = scmp.eq.s32.totalorder %s30, 7
      %p216 = por %p214, %p215
      %p217 = scmp.ne.s32.totalorder %s206, %s207
      %p218 = scmp.eq.s32.totalorder %s30, 0
      %p219 = por %p217, %p218
      %p220 = scmp.ne.s32.totalorder %s206, %s207
      %p221 = scmp.eq.s32.totalorder %s31, 7
      %p222 = por %p220, %p221
      %p224 = scmp.ne.s32.totalorder %s207, %s223
      %p225 = scmp.eq.s32.totalorder %s31, 0
      %p226 = por %p224, %p225
      %s228 = sadd.s32 %s227, 1
      %p231 = scmp.eq.s32.totalorder %s25, 7
      %p232 = scmp.ne.s32.totalorder %s227, %s229
      %p233 = scmp.eq.s32.totalorder %s25, 0
      %p234 = por %p232, %p233
      %p235 = scmp.ne.s32.totalorder %s227, %s229
      %p236 = scmp.eq.s32.totalorder %s30, 7
      %p237 = por %p235, %p236
      %p238 = scmp.ne.s32.totalorder %s229, %s230
      %p239 = scmp.eq.s32.totalorder %s30, 0
      %p240 = por %p238, %p239
      %p241 = scmp.ne.s32.totalorder %s229, %s230
      %p242 = scmp.eq.s32.totalorder %s31, 7
      %p243 = por %p241, %p242
      %p245 = scmp.ne.s32.totalorder %s230, %s244
      %p246 = scmp.eq.s32.totalorder %s31, 0
      %p247 = por %p245, %p246
      %s248 = ssub.s32 %s32, %s51
      %s249 = ssub.s32 %s33, %s47
      %s250 = sor.u32 %s248, %s249
      %p251 = scmp.eq.s32.totalorder %s250, 0
      %s253 = sadd.s32 %s252, 1
      %s254 = scalar_select %p251, %s252, %s253
      %p257 = pneg %p251
      %p258 = scmp.eq.s32.totalorder %s25, 7
      %p259 = por %p257, %p258
      %p260 = scmp.ne.s32.totalorder %s252, %s255
      %p261 = scmp.eq.s32.totalorder %s25, 0
      %p262 = por %p260, %p261
      %p263 = scmp.ne.s32.totalorder %s252, %s255
      %p264 = scmp.eq.s32.totalorder %s30, 7
      %p265 = por %p263, %p264
      %p266 = scmp.ne.s32.totalorder %s255, %s256
      %p267 = scmp.eq.s32.totalorder %s30, 0
      %p268 = por %p266, %p267
      %p269 = scmp.ne.s32.totalorder %s255, %s256
      %p270 = scmp.eq.s32.totalorder %s31, 7
      %p271 = por %p269, %p270
      %p273 = scmp.ne.s32.totalorder %s256, %s272
      %p274 = scmp.eq.s32.totalorder %s31, 0
      %p275 = por %p273, %p274
      %p276 = scmp.le.s32.totalorder 1, %s25
      %p277 = scmp.lt.s32.totalorder %s25, 9
      %p278 = pnand %p276, %p277
      %p279 = pneg %p278
      // Predicated region
      $region9: #{tpu_custom_call.1} parent=5 // pred_check
        _
      $region10: #{tpu_custom_call.1} parent=5 // pred_check_branch
        %281 = sbr.rel (%p278) target = $region12
      $region11: #{tpu_custom_call.1} parent=5 // pred_region
        %s282 = ssub.s32 %s25, 1
        // Predicated region
        $region13: #{tpu_custom_call.1} parent=11 // pred_check
          %p283 = pneg %p151
        $region14: #{tpu_custom_call.1} parent=11 // pred_check_branch
          %285 = sbr.rel (%p283) target = $region16
        $region15: #{tpu_custom_call.1} parent=11 // pred_region
          %287 = vsyncadd [#allocation10], 0
          %s289 = sshll.u32 %s3, 4
          %s290 = int_to_ptr.hbm [resolvable:$true] %s289
          %s291 = sshll.u32 [#allocation9], 4
          %s292 = int_to_ptr.vmem [resolvable:$true] %s291
          %294 = dma.hbm_to_vmem [thread:$0]  %s290, 128, %s292, [#allocation10]
        $region16: #{tpu_custom_call.1} parent=11 // pred_fallthru
          _
        // Predicated region
        $region17: #{tpu_custom_call.1} parent=11 // pred_check
          %p295 = pneg %p172
        $region18: #{tpu_custom_call.1} parent=11 // pred_check_branch
          %297 = sbr.rel (%p295) target = $region20
        $region19: #{tpu_custom_call.1} parent=11 // pred_region
          %299 = vsyncadd [#allocation10], 0
          %s301 = sshll.u32 %s4, 4
          %s302 = int_to_ptr.hbm [resolvable:$true] %s301
          %s303 = sshll.u32 [#allocation11], 4
          %s304 = int_to_ptr.vmem [resolvable:$true] %s303
          %306 = dma.hbm_to_vmem [thread:$0]  %s302, 128, %s304, [#allocation10]
        $region20: #{tpu_custom_call.1} parent=11 // pred_fallthru
          _
        // Predicated region
        $region21: #{tpu_custom_call.1} parent=11 // pred_check
          %p307 = pneg %p193
        $region22: #{tpu_custom_call.1} parent=11 // pred_check_branch
          %309 = sbr.rel (%p307) target = $region24
        $region23: #{tpu_custom_call.1} parent=11 // pred_region
          %311 = vsyncadd [#allocation13], 0
          %s313 = sshll.u32 %s5, 4
          %s314 = int_to_ptr.hbm [resolvable:$true] %s313
          %s315 = sshll.u32 [#allocation12], 4
          %s316 = int_to_ptr.vmem [resolvable:$true] %s315
          %318 = dma.hbm_to_vmem [thread:$0]  %s314, 128, %s316, [#allocation13]
        $region24: #{tpu_custom_call.1} parent=11 // pred_fallthru
          _
        // Predicated region
        $region25: #{tpu_custom_call.1} parent=11 // pred_check
          %p319 = pneg %p240
        $region26: #{tpu_custom_call.1} parent=11 // pred_check_branch
          %321 = sbr.rel (%p319) target = $region28
        $region27: #{tpu_custom_call.1} parent=11 // pred_region
          _
        $region28: #{tpu_custom_call.1} parent=11 // pred_fallthru
          _
      $region12: #{tpu_custom_call.1} parent=5 // pred_fallthru
        _
      %p322 = scmp.lt.s32.totalorder %s25, 8
      // Predicated region
      $region29: #{tpu_custom_call.1} parent=5 // pred_check
        %p323 = pneg %p322
      $region30: #{tpu_custom_call.1} parent=5 // pred_check_branch
        %325 = sbr.rel (%p323) target = $region32
      $region31: #{tpu_custom_call.1} parent=5 // pred_region
        // Predicated region
        $region33: #{tpu_custom_call.1} parent=31 // pred_check
          %p326 = pneg %p68
        $region34: #{tpu_custom_call.1} parent=31 // pred_check_branch
          %328 = sbr.rel (%p326) target = $region36
        $region35: #{tpu_custom_call.1} parent=31 // pred_region
          %s329 = sand.u32 %s25, 1
          %s330 = scalar_lea.sflag [#allocation4], %s329
          %s331 = sand.u32 %s58, 1
          %s332 = smul.addr %s331, 8
          %s333 = scalar_lea.vmem [#allocation3], %s332
          %335 = vsyncadd %s330, 0
          %s336 = sadd.s32 %s33, %s34
          %s337 = smul.addr %s32, 4
          %s338 = sadd.s32 %s336, %s337
          %s339 = smul.addr %s338, 8
          %s340 = scalar_lea.hbm %s0, %s339
          %s342 = sshll.u32 %s340, 4
          %s343 = int_to_ptr.hbm [resolvable:$true] %s342
          %s344 = sshll.u32 %s333, 4
          %s345 = int_to_ptr.vmem [resolvable:$true] %s344
          %347 = dma.hbm_to_vmem [thread:$0]  %s343, 128, %s345, %s330
        $region36: #{tpu_custom_call.1} parent=31 // pred_fallthru
          _
        // Predicated region
        $region37: #{tpu_custom_call.1} parent=31 // pred_check
          %p348 = pneg %p96
        $region38: #{tpu_custom_call.1} parent=31 // pred_check_branch
          %350 = sbr.rel (%p348) target = $region40
        $region39: #{tpu_custom_call.1} parent=31 // pred_region
          %s351 = sand.u32 %s25, 1
          %s352 = scalar_lea.sflag [#allocation7], %s351
          %s353 = sand.u32 %s86, 1
          %s354 = smul.addr %s353, 8
          %s355 = scalar_lea.vmem [#allocation6], %s354
          %357 = vsyncadd %s352, 0
          %s358 = smul.addr %s32, 4
          %s359 = sadd.s32 %s34, %s358
          %s360 = smul.addr %s359, 8
          %s361 = scalar_lea.hbm %s1, %s360
          %s363 = sshll.u32 %s361, 4
          %s364 = int_to_ptr.hbm [resolvable:$true] %s363
          %s365 = sshll.u32 %s355, 4
          %s366 = int_to_ptr.vmem [resolvable:$true] %s365
          %368 = dma.hbm_to_vmem [thread:$0]  %s364, 128, %s366, %s352
        $region40: #{tpu_custom_call.1} parent=31 // pred_fallthru
          _
        // Predicated region
        $region41: #{tpu_custom_call.1} parent=31 // pred_check
          %p369 = pneg %p124
        $region42: #{tpu_custom_call.1} parent=31 // pred_check_branch
          %371 = sbr.rel (%p369) target = $region44
        $region43: #{tpu_custom_call.1} parent=31 // pred_region
          %s372 = sand.u32 %s25, 1
          %s373 = scalar_lea.sflag [#allocation7], %s372
          %s374 = sand.u32 %s114, 1
          %s375 = smul.addr %s374, 8
          %s376 = scalar_lea.vmem [#allocation8], %s375
          %378 = vsyncadd %s373, 0
          %s379 = smul.addr %s32, 4
          %s380 = sadd.s32 %s34, %s379
          %s381 = smul.addr %s380, 8
          %s382 = scalar_lea.hbm %s2, %s381
          %s384 = sshll.u32 %s382, 4
          %s385 = int_to_ptr.hbm [resolvable:$true] %s384
          %s386 = sshll.u32 %s376, 4
          %s387 = int_to_ptr.vmem [resolvable:$true] %s386
          %389 = dma.hbm_to_vmem [thread:$0]  %s385, 128, %s387, %s373
        $region44: #{tpu_custom_call.1} parent=31 // pred_fallthru
          _
        // Predicated region
        $region45: #{tpu_custom_call.1} parent=31 // pred_check
          %p390 = pneg %p213
        $region46: #{tpu_custom_call.1} parent=31 // pred_check_branch
          %392 = sbr.rel (%p390) target = $region48
        $region47: #{tpu_custom_call.1} parent=31 // pred_region
          %s393 = sand.u32 %s25, 1
          %s394 = scalar_lea.sflag [#allocation4], %s393
          %s395 = sand.u32 %s203, 1
          %s396 = smul.addr %s395, 8
          %s397 = scalar_lea.vmem [#allocation14], %s396
          %399 = vsyncadd %s394, 0
          %s400 = smul.addr %s34, 8
          %s401 = scalar_lea.hbm %s6, %s400
          %s403 = sshll.u32 %s401, 4
          %s404 = int_to_ptr.hbm [resolvable:$true] %s403
          %s405 = sshll.u32 %s397, 4
          %s406 = int_to_ptr.vmem [resolvable:$true] %s405
          %408 = dma.hbm_to_vmem [thread:$0]  %s404, 128, %s406, %s394
        $region48: #{tpu_custom_call.1} parent=31 // pred_fallthru
          _
      $region32: #{tpu_custom_call.1} parent=5 // pred_fallthru
        _
      %p409 = scmp.le.s32.totalorder 1, %s25
      %p410 = scmp.lt.s32.totalorder %s25, 9
      %p411 = pnand %p409, %p410
      %p412 = pneg %p411
      // Predicated region
      $region49: #{tpu_custom_call.1} parent=5 // pred_check
        _
      $region50: #{tpu_custom_call.1} parent=5 // pred_check_branch
        %414 = sbr.rel (%p411) target = $region52
      $region51: #{tpu_custom_call.1} parent=5 // pred_region
        %s415 = ssub.s32 %s25, 1
        %s416 = sand.u32 %s30, 1
        %s417 = scalar_lea.sflag [#allocation4], %s416
        %s418 = sand.u32 %s61, 1
        %s419 = smul.addr %s418, 8
        %s420 = scalar_lea.vmem [#allocation3], %s419
        // Predicated region
        $region53: #{tpu_custom_call.1} parent=51 // pred_check
          %p421 = pneg %p74
        $region54: #{tpu_custom_call.1} parent=51 // pred_check_branch
          %423 = sbr.rel (%p421) target = $region56
        $region55: #{tpu_custom_call.1} parent=51 // pred_region
          %425 = dma.done %s417, 128
        $region56: #{tpu_custom_call.1} parent=51 // pred_fallthru
          _
        %s426 = sand.u32 %s30, 1
        %s427 = scalar_lea.sflag [#allocation7], %s426
        %s428 = sand.u32 %s89, 1
        %s429 = smul.addr %s428, 8
        %s430 = scalar_lea.vmem [#allocation6], %s429
        // Predicated region
        $region57: #{tpu_custom_call.1} parent=51 // pred_check
          %p431 = pneg %p102
        $region58: #{tpu_custom_call.1} parent=51 // pred_check_branch
          %433 = sbr.rel (%p431) target = $region60
        $region59: #{tpu_custom_call.1} parent=51 // pred_region
          %435 = dma.done %s427, 128
        $region60: #{tpu_custom_call.1} parent=51 // pred_fallthru
          _
        %s436 = sand.u32 %s30, 1
        %s437 = scalar_lea.sflag [#allocation7], %s436
        %s438 = sand.u32 %s117, 1
        %s439 = smul.addr %s438, 8
        %s440 = scalar_lea.vmem [#allocation8], %s439
        // Predicated region
        $region61: #{tpu_custom_call.1} parent=51 // pred_check
          %p441 = pneg %p130
        $region62: #{tpu_custom_call.1} parent=51 // pred_check_branch
          %443 = sbr.rel (%p441) target = $region64
        $region63: #{tpu_custom_call.1} parent=51 // pred_region
          %445 = dma.done %s437, 128
        $region64: #{tpu_custom_call.1} parent=51 // pred_fallthru
          _
        // Predicated region
        $region65: #{tpu_custom_call.1} parent=51 // pred_check
          %p446 = pneg %p151
        $region66: #{tpu_custom_call.1} parent=51 // pred_check_branch
          %448 = sbr.rel (%p446) target = $region68
        $region67: #{tpu_custom_call.1} parent=51 // pred_region
          %450 = dma.done [#allocation10], 128
        $region68: #{tpu_custom_call.1} parent=51 // pred_fallthru
          _
        // Predicated region
        $region69: #{tpu_custom_call.1} parent=51 // pred_check
          %p451 = pneg %p172
        $region70: #{tpu_custom_call.1} parent=51 // pred_check_branch
          %453 = sbr.rel (%p451) target = $region72
        $region71: #{tpu_custom_call.1} parent=51 // pred_region
          %455 = dma.done [#allocation10], 128
        $region72: #{tpu_custom_call.1} parent=51 // pred_fallthru
          _
        // Predicated region
        $region73: #{tpu_custom_call.1} parent=51 // pred_check
          %p456 = pneg %p193
        $region74: #{tpu_custom_call.1} parent=51 // pred_check_branch
          %458 = sbr.rel (%p456) target = $region76
        $region75: #{tpu_custom_call.1} parent=51 // pred_region
          %460 = dma.done [#allocation13], 128
        $region76: #{tpu_custom_call.1} parent=51 // pred_fallthru
          _
        %s461 = sand.u32 %s30, 1
        %s462 = scalar_lea.sflag [#allocation4], %s461
        %s463 = sand.u32 %s206, 1
        %s464 = smul.addr %s463, 8
        %s465 = scalar_lea.vmem [#allocation14], %s464
        // Predicated region
        $region77: #{tpu_custom_call.1} parent=51 // pred_check
          %p466 = pneg %p219
        $region78: #{tpu_custom_call.1} parent=51 // pred_check_branch
          %468 = sbr.rel (%p466) target = $region80
        $region79: #{tpu_custom_call.1} parent=51 // pred_region
          %470 = dma.done %s462, 128
        $region80: #{tpu_custom_call.1} parent=51 // pred_fallthru
          _
        %s471 = sand.u32 %s30, 1
        %s472 = scalar_lea.sflag [#allocation4], %s471
        %s473 = sand.u32 %s61, 1
        %s474 = smul.addr %s473, 8
        %s475 = scalar_lea.vmem [#allocation3], %s474
        %p476 = pneg %p74
        %p477 = pneg %p71
        %s478 = sand.u32 %s30, 1
        %s479 = scalar_lea.sflag [#allocation7], %s478
        %s480 = sand.u32 %s89, 1
        %s481 = smul.addr %s480, 8
        %s482 = scalar_lea.vmem [#allocation6], %s481
        %p483 = pneg %p102
        %p484 = pneg %p99
        %s485 = sand.u32 %s30, 1
        %s486 = scalar_lea.sflag [#allocation7], %s485
        %s487 = sand.u32 %s117, 1
        %s488 = smul.addr %s487, 8
        %s489 = scalar_lea.vmem [#allocation8], %s488
        %p490 = pneg %p130
        %p491 = pneg %p127
        %p492 = pneg %p151
        %p493 = pneg %p148
        %p494 = pneg %p172
        %p495 = pneg %p169
        %p496 = pneg %p193
        %p497 = pneg %p190
        %s498 = sand.u32 %s30, 1
        %s499 = scalar_lea.sflag [#allocation4], %s498
        %s500 = sand.u32 %s206, 1
        %s501 = smul.addr %s500, 8
        %s502 = scalar_lea.vmem [#allocation14], %s501
        %p503 = pneg %p219
        %p504 = pneg %p216
        %p505 = pneg %p240
        %p506 = pneg %p237
        %p507 = pneg %p268
        %p508 = pneg %p265
        %s509 = sand.u32 %s255, 1
        %s510 = scalar_lea.sflag [#allocation5], %s509
        %s511 = sand.u32 %s255, 1
        %s512 = smul.addr %s511, 8
        %s513 = scalar_lea.vmem [#allocation15], %s512
        %p514 = scmp.eq.s32.totalorder %s37, 0
        // Predicated region
        $region81: #{tpu_custom_call.1} parent=51 // pred_check
          %p515 = pneg %p514
        $region82: #{tpu_custom_call.1} parent=51 // pred_check_branch
          %517 = sbr.rel (%p515) target = $region84
        $region83: #{tpu_custom_call.1} parent=51 // pred_region
          %vm518 = vcmask 261120
          %519 = vst.msk [vmem:[#allocation2] sm:$0xff] %vm518, 0.0
        $region84: #{tpu_custom_call.1} parent=51 // pred_fallthru
          _
        %v520 = vld [vmem:[%s420] sm:$0xff]
        %v521 = vld [vmem:[#allocation9] sm:$0xff]
        %vm522 = vcmask 64512
        %v524 = vsel %vm522, %v520, 0
        %526 = vmatpush.msra.mxu0 0.0
        %527 = vmatpush.msra.mxu0 0.0
        %528 = vmatpush.msra.mxu0 0.0
        %529 = vmatpush.msra.mxu0 0.0
        %530 = vmatpush.msra.mxu0 0.0
        %531 = vmatpush.msra.mxu0 0.0
        %532 = vmatpush.msra.mxu0 0.0
        %533 = vmatpush.msra.mxu0 0.0
        %534 = vmatpush.msra.mxu0 0.0
        %535 = vmatpush.msra.mxu0 0.0
        %536 = vmatpush.msra.mxu0 0.0
        %537 = vmatpush.msra.mxu0 0.0
        %538 = vmatpush.msra.mxu0 0.0
        %539 = vmatpush.msra.mxu0 0.0
        %540 = vmatpush.msra.mxu0 0.0
        %541 = vmatpush.msra.mxu0 %v521
        %542 = vmatmul.f32.gmra.mxu0 %v524
        %v543 = vpop.f32.mrf.mxu0
        %v544 = vadd.f32 0.0, %v543
        %545 = vdwg.mxu0
        %v546 = vld [vmem:[%s430] sm:$0xff]
        %v547 = vld [vmem:[#allocation11] sm:$0xff]
        %v549 = vsel %vm522, %v546, 0
        %551 = vmatpush.msra.mxu0 0.0
        %552 = vmatpush.msra.mxu0 0.0
        %553 = vmatpush.msra.mxu0 0.0
        %554 = vmatpush.msra.mxu0 0.0
        %555 = vmatpush.msra.mxu0 0.0
        %556 = vmatpush.msra.mxu0 0.0
        %557 = vmatpush.msra.mxu0 0.0
        %558 = vmatpush.msra.mxu0 0.0
        %559 = vmatpush.msra.mxu0 0.0
        %560 = vmatpush.msra.mxu0 0.0
        %561 = vmatpush.msra.mxu0 0.0
        %562 = vmatpush.msra.mxu0 0.0
        %563 = vmatpush.msra.mxu0 0.0
        %564 = vmatpush.msra.mxu0 0.0
        %565 = vmatpush.msra.mxu0 0.0
        %566 = vmatpush.msra.mxu0 %v547
        %567 = vmatmul.f32.gmra.mxu0 %v549
        %v568 = vpop.f32.mrf.mxu0
        %v569 = vadd.f32 0.0, %v568
        %570 = vdwg.mxu0
        %v571 = vld [vmem:[%s440] sm:$0xff]
        %v572 = vld [vmem:[#allocation12] sm:$0xff]
        %v574 = vsel %vm522, %v571, 0
        %576 = vmatpush.msra.mxu0 0.0
        %577 = vmatpush.msra.mxu0 0.0
        %578 = vmatpush.msra.mxu0 0.0
        %579 = vmatpush.msra.mxu0 0.0
        %580 = vmatpush.msra.mxu0 0.0
        %581 = vmatpush.msra.mxu0 0.0
        %582 = vmatpush.msra.mxu0 0.0
        %583 = vmatpush.msra.mxu0 0.0
        %584 = vmatpush.msra.mxu0 0.0
        %585 = vmatpush.msra.mxu0 0.0
        %586 = vmatpush.msra.mxu0 0.0
        %587 = vmatpush.msra.mxu0 0.0
        %588 = vmatpush.msra.mxu0 0.0
        %589 = vmatpush.msra.mxu0 0.0
        %590 = vmatpush.msra.mxu0 0.0
        %591 = vmatpush.msra.mxu0 %v572
        %592 = vmatmul.f32.gmra.mxu0 %v574
        %v593 = vpop.f32.mrf.mxu0
        %v594 = vadd.f32 0.0, %v593
        %595 = vdwg.mxu0
        %v597 = vsel %vm522, %v544, 0
        %v600 = vsel %vm522, %v569, 0
        %602 = vmatpush.xpose.msra.mxu0 0.0
        %603 = vmatpush.xpose.msra.mxu0 0.0
        %604 = vmatpush.xpose.msra.mxu0 0.0
        %605 = vmatpush.xpose.msra.mxu0 0.0
        %606 = vmatpush.xpose.msra.mxu0 0.0
        %607 = vmatpush.xpose.msra.mxu0 0.0
        %608 = vmatpush.xpose.msra.mxu0 0.0
        %609 = vmatpush.xpose.msra.mxu0 0.0
        %610 = vmatpush.xpose.msra.mxu0 0.0
        %611 = vmatpush.xpose.msra.mxu0 0.0
        %612 = vmatpush.xpose.msra.mxu0 0.0
        %613 = vmatpush.xpose.msra.mxu0 0.0
        %614 = vmatpush.xpose.msra.mxu0 0.0
        %615 = vmatpush.xpose.msra.mxu0 0.0
        %616 = vmatpush.xpose.msra.mxu0 0.0
        %617 = vmatpush.xpose.msra.mxu0 %v600
        %618 = vmatmul.f32.gmra.mxu0 %v597
        %v619 = vpop.f32.mrf.mxu0
        %v620 = vadd.f32 0.0, %v619
        %621 = vdwg.mxu0
        %v622 = vmul.f32 %v620, 0.17677669
        %v623 = vsel %vm522, %v622, -inf
        %624 = vmax.xlane.f32.xlu0 %v623
        %v625 = vpop.xlane.xlu0 %624
        %v626 = vsub.f32 %v622, %v625
        %v627 = vmul.f32 %v626, 1.442695
        %v628 = vpow.pop %v627
        %v629 = vsel %vm522, %v628, 0.0
        %630 = vadd.xlane.f32.xlu0 %v629
        %v631 = vpop.xlane.xlu0 %630
        %v632 = vrcp.pop %v631
        %v633 = vmul.f32 %v631, %v632
        %v634 = vsub.f32 1.0, %v633
        %v635 = vmul.f32 %v632, %v634
        %v636 = vadd.f32 %v632, %v635
        %vm637 = vweird.f32 %v631
        %vm638 = vweird.f32 %v632
        %vm639 = vmor %vm637, %vm638
        %v640 = vsel %vm639, %v632, %v636
        %v641 = vand.u32 2147483647, %v631
        %vm642 = vcmp.eq.f32.partialorder %v641, 8.507059e+37
        %v643 = vand.u32 %v631, 2147483648
        %v644 = vor.u32 1.1754944e-38, %v643
        %v645 = vsel %vm642, %v644, %v640
        %v646 = vmul.f32 %v628, %v645
        %v648 = vsel %vm522, %v646, 0
        %650 = vmatpush.msra.mxu0 0.0
        %651 = vmatpush.msra.mxu0 0.0
        %652 = vmatpush.msra.mxu0 0.0
        %653 = vmatpush.msra.mxu0 0.0
        %654 = vmatpush.msra.mxu0 0.0
        %655 = vmatpush.msra.mxu0 0.0
        %656 = vmatpush.msra.mxu0 0.0
        %657 = vmatpush.msra.mxu0 0.0
        %658 = vmatpush.msra.mxu0 0.0
        %659 = vmatpush.msra.mxu0 0.0
        %660 = vmatpush.msra.mxu0 0.0
        %661 = vmatpush.msra.mxu0 0.0
        %662 = vmatpush.msra.mxu0 0.0
        %663 = vmatpush.msra.mxu0 0.0
        %664 = vmatpush.msra.mxu0 0.0
        %665 = vmatpush.msra.mxu0 %v594
        %666 = vmatmul.f32.gmra.mxu0 %v648
        %v667 = vpop.f32.mrf.mxu0
        %v668 = vadd.f32 0.0, %v667
        %669 = vdwg.mxu0
        %v670 = vld [vmem:[#allocation2] sm:$0xff]
        %v671 = vld [vmem:[%s465] sm:$0xff]
        %v673 = vsel %vm522, %v668, 0
        %675 = vmatpush.msra.mxu0 0.0
        %676 = vmatpush.msra.mxu0 0.0
        %677 = vmatpush.msra.mxu0 0.0
        %678 = vmatpush.msra.mxu0 0.0
        %679 = vmatpush.msra.mxu0 0.0
        %680 = vmatpush.msra.mxu0 0.0
        %681 = vmatpush.msra.mxu0 0.0
        %682 = vmatpush.msra.mxu0 0.0
        %683 = vmatpush.msra.mxu0 0.0
        %684 = vmatpush.msra.mxu0 0.0
        %685 = vmatpush.msra.mxu0 0.0
        %686 = vmatpush.msra.mxu0 0.0
        %687 = vmatpush.msra.mxu0 0.0
        %688 = vmatpush.msra.mxu0 0.0
        %689 = vmatpush.msra.mxu0 0.0
        %690 = vmatpush.msra.mxu0 %v671
        %691 = vmatmul.f32.gmra.mxu0 %v673
        %v692 = vpop.f32.mrf.mxu0
        %v693 = vadd.f32 0.0, %v692
        %694 = vdwg.mxu0
        %v695 = vadd.f32 %v670, %v693
        %vm696 = vcmask 261120
        %697 = vst.msk [vmem:[#allocation2] sm:$0xff] %vm696, %v695
        %p698 = scmp.eq.s32.totalorder %s37, 3
        // Predicated region
        $region85: #{tpu_custom_call.1} parent=51 // pred_check
          %p699 = pneg %p698
        $region86: #{tpu_custom_call.1} parent=51 // pred_check_branch
          %701 = sbr.rel (%p699) target = $region88
        $region87: #{tpu_custom_call.1} parent=51 // pred_region
          %v702 = vld [vmem:[#allocation2] sm:$0xff]
          %v703 = vld [vmem:[%s7] sm:$0x1]
          %v705 = vperm.slane %v703, 0
          %v707 = vadd.f32 %v702, %v705
          %708 = vst.msk [vmem:[%s513] sm:$0xff] %vm696, %v707
        $region88: #{tpu_custom_call.1} parent=51 // pred_fallthru
          _
        %s709 = sand.u32 %s255, 1
        %s710 = scalar_lea.sflag [#allocation5], %s709
        %s711 = sand.u32 %s255, 1
        %s712 = smul.addr %s711, 8
        %s713 = scalar_lea.vmem [#allocation15], %s712
        // Predicated region
        $region89: #{tpu_custom_call.1} parent=51 // pred_check
          %p714 = pneg %p265
        $region90: #{tpu_custom_call.1} parent=51 // pred_check_branch
          %716 = sbr.rel (%p714) target = $region92
        $region91: #{tpu_custom_call.1} parent=51 // pred_region
          %718 = vsyncadd %s710, 0
          %s719 = sadd.s32 %s36, %s35
          %s720 = smul.addr %s719, 8
          %s721 = scalar_lea.hbm %s8, %s720
          %s723 = sshll.u32 %s713, 4
          %s724 = int_to_ptr.vmem [resolvable:$true] %s723
          %s725 = sshll.u32 %s721, 4
          %s726 = int_to_ptr.hbm [resolvable:$true] %s725
          %728 = dma.vmem_to_hbm [thread:$0]  %s724, 128, %s726, %s710
        $region92: #{tpu_custom_call.1} parent=51 // pred_fallthru
          _
      $region52: #{tpu_custom_call.1} parent=5 // pred_fallthru
        _
      %p729 = scmp.le.s32.totalorder 2, %s25
      // Predicated region
      $region93: #{tpu_custom_call.1} parent=5 // pred_check
        %p730 = pneg %p729
      $region94: #{tpu_custom_call.1} parent=5 // pred_check_branch
        %732 = sbr.rel (%p730) target = $region96
      $region95: #{tpu_custom_call.1} parent=5 // pred_region
        %s733 = ssub.s32 %s25, 2
        // Predicated region
        $region97: #{tpu_custom_call.1} parent=95 // pred_check
          %p734 = pneg %p271
        $region98: #{tpu_custom_call.1} parent=95 // pred_check_branch
          %736 = sbr.rel (%p734) target = $region100
        $region99: #{tpu_custom_call.1} parent=95 // pred_region
          %s737 = sand.u32 %s256, 1
          %s738 = scalar_lea.sflag [#allocation5], %s737
          %s739 = sand.u32 %s256, 1
          %s740 = smul.addr %s739, 8
          %s741 = scalar_lea.vmem [#allocation15], %s740
          %743 = dma.done %s738, 128
        $region100: #{tpu_custom_call.1} parent=95 // pred_fallthru
          _
      $region96: #{tpu_custom_call.1} parent=5 // pred_fallthru
        _
    $region6: #{tpu_custom_call.1} parent=1 // loop_footer
      %s29 = sadd.s32 1, %s25
    $region7: #{tpu_custom_call.1} parent=1 // loop_footer_branch
      %24 = sbr.rel target = $region3
    $region8: #{tpu_custom_call.1} parent=1 // loop_exit
      _
    %744 = vsyncpa [#allocation4], 1
    %s745 = scalar_lea.sflag [#allocation4], 1
    %746 = vsyncpa %s745, 1
    %747 = vsyncpa [#allocation7], 1
    %s748 = scalar_lea.sflag [#allocation7], 1
    %749 = vsyncpa %s748, 1
    %750 = vsyncpa [#allocation10], 1
    %751 = vsyncpa [#allocation13], 1
    %752 = vsyncpa [#allocation5], 1
    %s753 = scalar_lea.sflag [#allocation5], 1
    %754 = vsyncpa %s753, 1

</llo_original>
